<compile_context>
chip_gen: v6e
topology: v6e:2x2x1
jax: 0.10.0
libtpu: 0.0.40
codegen_flags: <defaults>
</compile_context>

<pallas_src>
import jax
import jax.numpy as jnp
from jax.experimental import pallas as pl
from jax.experimental.pallas import tpu as pltpu


def _balance_bce_kernel(gt_ref, mask_ref, pred_ref, v_ref, w_ref, part_ref):
    g = gt_ref[...]      # (N, T)  gt[:, 0, ...] flattened (assumed binary 0/1)
    m = mask_ref[...]    # (N, T)  mask flattened (assumed binary 0/1)
    p = pred_ref[...]    # (N, T)

    n = jnp.float32(g.shape[0])

    # nn.functional.binary_cross_entropy(reduction='none') with log clamp at -100
    log_p = jnp.maximum(jnp.log(p), -100.0)
    log_1mp = jnp.maximum(jnp.log(1.0 - p), -100.0)
    loss = -(g * log_p + (1.0 - g) * log_1mp)        # (N, T)

    ml = loss * m                                     # masked loss values (N, T)

    # Separable (factored) reductions of the PyTorch (N, N, H, W) broadcast:
    cg = jnp.sum(g, axis=0, keepdims=True)            # (1, T)  sum_a gt
    c0 = n - cg                                       # (1, T)  sum_a (1 - gt)
    cm = jnp.sum(m, axis=0, keepdims=True)            # (1, T)  sum_b mask
    cml = jnp.sum(ml, axis=0, keepdims=True)          # (1, T)  sum_b mask*loss

    v_ref[...] = ml                                   # negative candidate values
    w_ref[...] = c0 * m                               # multiplicity of each candidate

    s_pos_loss = jnp.sum(cg * cml)                    # = positive_loss.sum() (tile partial)
    s_pos_cnt = jnp.sum(cg * cm)                      # = positive.float().sum() (tile partial)
    s_neg_cnt = jnp.sum(c0 * cm)                      # = negative.float().sum() (tile partial)

    # Lane-dense partial-sum block: sublane 0 -> pos_loss, 1 -> pos_cnt, 2 -> neg_cnt.
    sub = jax.lax.broadcasted_iota(jnp.int32, (1, 8, 128), 1)
    part_ref[...] = jnp.where(
        sub == 0, s_pos_loss,
        jnp.where(sub == 1, s_pos_cnt,
                  jnp.where(sub == 2, s_neg_cnt, 0.0)))


def _choose_tile(n, hw):
    """Lane-dense spatial tile (multiple of 128), sized so double-buffered
    blocks stay well inside scoped VMEM on v5e/v6e/v7x."""
    hw128 = ((hw + 127) // 128) * 128
    budget_bytes = 12 * 1024 * 1024                  # leave pipeline headroom (v7x: 64 MiB phys)
    per_col = 2 * (3 + 2) * n * 4                    # 2x double-buffer, 3 inputs + 2 (N,T) outputs, f32
    t = max(128, (budget_bytes // per_col) // 128 * 128)
    return int(min(t, 2048, hw128))


def balance_cross_entropy_loss(pred, gt, mask, negative_ratio=3.0, eps=1e-6,
                               return_origin=False):
    """pred, gt: (N, 1, H, W); mask: (N, H, W). Returns scalar f32 (traced, jittable)."""
    N, C, H, W = pred.shape
    assert C == 1
    HW = H * W

    pred_f = pred.reshape(N, HW).astype(jnp.float32)
    gt_f = gt.reshape(N, HW).astype(jnp.float32)
    mask_f = mask.reshape(N, HW).astype(jnp.float32)

    T = _choose_tile(N, HW)
    HWp = pl.cdiv(HW, T) * T
    if HWp != HW:
        pad = HWp - HW
        # Padding is masked out (mask=0 -> zero value, zero weight, zero counts).
        pred_p = jnp.pad(pred_f, ((0, 0), (0, pad)), constant_values=0.5)
        gt_p = jnp.pad(gt_f, ((0, 0), (0, pad)))
        mask_p = jnp.pad(mask_f, ((0, 0), (0, pad)))
    else:
        pred_p, gt_p, mask_p = pred_f, gt_f, mask_f

    num_tiles = HWp // T
    in_spec = pl.BlockSpec((N, T), lambda j: (0, j))

    out_shapes = (
        jax.ShapeDtypeStruct((N, HWp), jnp.float32),           # v = loss * mask
        jax.ShapeDtypeStruct((N, HWp), jnp.float32),           # w = multiplicity of v in (N,N,H,W)
        jax.ShapeDtypeStruct((num_tiles, 8, 128), jnp.float32),# per-tile partial sums
    )
    out_specs = (
        pl.BlockSpec((N, T), lambda j: (0, j)),
        pl.BlockSpec((N, T), lambda j: (0, j)),
        pl.BlockSpec((1, 8, 128), lambda j: (j, 0, 0)),
    )

    v, w, partials = pl.pallas_call(
        _balance_bce_kernel,
        out_shape=out_shapes,
        grid=(num_tiles,),
        in_specs=[in_spec, in_spec, in_spec],
        out_specs=out_specs,
        compiler_params=pltpu.CompilerParams(
            dimension_semantics=("parallel",),     # no carried state -> megacore-shardable
            vmem_limit_bytes=32 * 1024 * 1024,     # raise v5e's 16 MiB default; safe on v6e/v7x
        ),
    )(gt_p, mask_p, pred_p)

    pos_loss_sum = jnp.sum(partials[:, 0, 0])
    pos_cnt = jnp.sum(partials[:, 1, 0])
    neg_cnt = jnp.sum(partials[:, 2, 0])

    # negative_count = min(int(neg_count), int(pos_count * ratio)); counts are exact ints in f32.
    k = jnp.minimum(neg_cnt, jnp.floor(pos_cnt * negative_ratio))

    # Weighted top-k over the N*HW candidate values: each value v[b,t] appears
    # w[b,t] = (#negatives in column t) times in PyTorch's flattened (N,N,H,W)
    # negative_loss; values are >= 0 so sum-of-top-k equals the weighted walk.
    # TODO(synk): the data-dependent top-k itself has no Pallas TPU equivalent;
    # it is done with a fixed-size on-device sort (no host sync, no recompiles).
    v_flat = v.reshape(-1)
    w_flat = w.reshape(-1)
    neg_v_sorted, w_sorted = jax.lax.sort((-v_flat, w_flat), num_keys=1)
    v_sorted = -neg_v_sorted                       # descending by value
    cum_w = jnp.cumsum(w_sorted)
    take = jnp.clip(k - (cum_w - w_sorted), 0.0, w_sorted)
    neg_loss_sum = jnp.sum(take * v_sorted)

    balance_loss = (pos_loss_sum + neg_loss_sum) / (pos_cnt + k + eps)

    if return_origin:
        # Per-pixel BCE map (N, H, W); cold path, computed outside the kernel.
        loss_full = -(gt_f * jnp.maximum(jnp.log(pred_f), -100.0)
                      + (1.0 - gt_f) * jnp.maximum(jnp.log(1.0 - pred_f), -100.0))
        return balance_loss, loss_full.reshape(N, H, W)
    return balance_loss


def _reference(pred, gt, mask, negative_ratio=3.0, eps=1e-6):
    """Pure-JAX transcription of the PyTorch module (for validation only)."""
    g = gt[:, 0].astype(jnp.float32)               # (N,H,W)
    m = mask.astype(jnp.float32)                   # (N,H,W)
    p = pred[:, 0].astype(jnp.float32)
    positive = jnp.trunc(g[:, None] * m[None])     # (N,N,H,W)
    negative = jnp.trunc((1.0 - g)[:, None] * m[None])
    positive_count = int(positive.sum())
    negative_count = min(int(negative.sum()), int(positive_count * negative_ratio))
    loss = -(g * jnp.maximum(jnp.log(p), -100.0)
             + (1.0 - g) * jnp.maximum(jnp.log(1.0 - p), -100.0))   # (N,H,W)
    positive_loss = loss[None] * positive
    negative_loss = loss[None] * negative
    if negative_count > 0:
        neg_sum = jnp.sum(jax.lax.top_k(negative_loss.reshape(-1), negative_count)[0])
    else:
        neg_sum = jnp.float32(0.0)
    return (positive_loss.sum() + neg_sum) / (positive_count + negative_count + eps)


if __name__ == "__main__":
    key = jax.random.PRNGKey(0)
    k1, k2, k3 = jax.random.split(key, 3)
    N, H, W = 2, 16, 16

    # pred must be in (0, 1) for BCE; gt/mask are binary 0/1 floats (as in DBNet).
    pred = jax.nn.sigmoid(jax.random.normal(k1, (N, 1, H, W), dtype=jnp.float32))
    gt = (jax.random.uniform(k2, (N, 1, H, W)) > 0.7).astype(jnp.float32)
    mask = (jax.random.uniform(k3, (N, H, W)) > 0.2).astype(jnp.float32)

    out = balance_cross_entropy_loss(pred, gt, mask)
    out = jax.block_until_ready(out)

    ref = jax.block_until_ready(_reference(pred, gt, mask))

    assert out.shape == () and bool(jnp.isfinite(out))
    assert abs(float(out) - float(ref)) <= 1e-3 * max(1.0, abs(float(ref))), (
        float(out), float(ref))
    print("KERNEL_OK")
</pallas_src>

<mosaic_0001>
module attributes {stable_mosaic.version = 11 : i64} {
  func.func @_balance_bce_kernel(%arg0: i32, %arg1: memref<2x256xf32, #tpu.memory_space<vmem>>, %arg2: memref<2x256xf32, #tpu.memory_space<vmem>>, %arg3: memref<2x256xf32, #tpu.memory_space<vmem>>, %arg4: memref<2x256xf32, #tpu.memory_space<vmem>>, %arg5: memref<2x256xf32, #tpu.memory_space<vmem>>, %arg6: memref<1x8x128xf32, #tpu.memory_space<vmem>>) attributes {dimension_semantics = [#tpu.dimension_semantics<parallel>], iteration_bounds = array<i64: 1>, scalar_prefetch = 0 : i64, scratch_operands = 0 : i64, tpu.core_type = #tpu.core_type<tc>, window_params = [{transform_indices = @transform_0, window_bounds = array<i64: 2, 256>}, {transform_indices = @transform_1, window_bounds = array<i64: 2, 256>}, {transform_indices = @transform_2, window_bounds = array<i64: 2, 256>}, {transform_indices = @transform_3, window_bounds = array<i64: 2, 256>}, {transform_indices = @transform_4, window_bounds = array<i64: 2, 256>}, {transform_indices = @transform_5, window_bounds = array<i64: 1, 8, 128>}]} {
    %c0 = arith.constant 0 : index
    %c0_0 = arith.constant 0 : index
    %0 = vector.load %arg1[%c0, %c0_0] : memref<2x256xf32, #tpu.memory_space<vmem>>, vector<2x256xf32>
    %c0_1 = arith.constant 0 : index
    %c0_2 = arith.constant 0 : index
    %1 = vector.load %arg2[%c0_1, %c0_2] : memref<2x256xf32, #tpu.memory_space<vmem>>, vector<2x256xf32>
    %c0_3 = arith.constant 0 : index
    %c0_4 = arith.constant 0 : index
    %2 = vector.load %arg3[%c0_3, %c0_4] : memref<2x256xf32, #tpu.memory_space<vmem>>, vector<2x256xf32>
    %3 = math.log %2 : vector<2x256xf32>
    %cst = arith.constant -1.000000e+02 : f32
    %4 = vector.broadcast %cst : f32 to vector<2x256xf32>
    %5 = arith.maximumf %3, %4 : vector<2x256xf32>
    %cst_5 = arith.constant 1.000000e+00 : f32
    %6 = vector.broadcast %cst_5 : f32 to vector<2x256xf32>
    %7 = arith.subf %6, %2 : vector<2x256xf32>
    %8 = math.log %7 : vector<2x256xf32>
    %cst_6 = arith.constant -1.000000e+02 : f32
    %9 = vector.broadcast %cst_6 : f32 to vector<2x256xf32>
    %10 = arith.maximumf %8, %9 : vector<2x256xf32>
    %11 = arith.mulf %0, %5 : vector<2x256xf32>
    %cst_7 = arith.constant 1.000000e+00 : f32
    %12 = vector.broadcast %cst_7 : f32 to vector<2x256xf32>
    %13 = arith.subf %12, %0 : vector<2x256xf32>
    %14 = arith.mulf %13, %10 : vector<2x256xf32>
    %15 = arith.addf %11, %14 : vector<2x256xf32>
    %cst_8 = arith.constant 0.000000e+00 : f32
    %16 = vector.broadcast %cst_8 : f32 to vector<2x256xf32>
    %17 = arith.subf %16, %15 : vector<2x256xf32>
    %18 = arith.mulf %17, %1 : vector<2x256xf32>
    %cst_9 = arith.constant dense<0.000000e+00> : vector<256xf32>
    %19 = vector.multi_reduction <add>, %0, %cst_9 [0] : vector<2x256xf32> to vector<256xf32>
    %20 = vector.shape_cast %19 : vector<256xf32> to vector<1x256xf32>
    %cst_10 = arith.constant 2.000000e+00 : f32
    %21 = vector.broadcast %cst_10 : f32 to vector<1x256xf32>
    %22 = arith.subf %21, %20 : vector<1x256xf32>
    %cst_11 = arith.constant dense<0.000000e+00> : vector<256xf32>
    %23 = vector.multi_reduction <add>, %1, %cst_11 [0] : vector<2x256xf32> to vector<256xf32>
    %24 = vector.shape_cast %23 : vector<256xf32> to vector<1x256xf32>
    %cst_12 = arith.constant dense<0.000000e+00> : vector<256xf32>
    %25 = vector.multi_reduction <add>, %18, %cst_12 [0] : vector<2x256xf32> to vector<256xf32>
    %26 = vector.shape_cast %25 : vector<256xf32> to vector<1x256xf32>
    %c0_13 = arith.constant 0 : index
    %c0_14 = arith.constant 0 : index
    %27 = vector.load %arg4[%c0_13, %c0_14] : memref<2x256xf32, #tpu.memory_space<vmem>>, vector<2x256xf32>
    tpu.vector_store %arg4[%c0_13, %c0_14], %18 {strides = array<i32>} : memref<2x256xf32, #tpu.memory_space<vmem>>, vector<2x256xf32>,
    %28 = vector.broadcast %22 : vector<1x256xf32> to vector<2x256xf32>
    %29 = arith.mulf %28, %1 : vector<2x256xf32>
    %c0_15 = arith.constant 0 : index
    %c0_16 = arith.constant 0 : index
    %30 = vector.load %arg5[%c0_15, %c0_16] : memref<2x256xf32, #tpu.memory_space<vmem>>, vector<2x256xf32>
    tpu.vector_store %arg5[%c0_15, %c0_16], %29 {strides = array<i32>} : memref<2x256xf32, #tpu.memory_space<vmem>>, vector<2x256xf32>,
    %31 = arith.mulf %20, %26 : vector<1x256xf32>
    %32 = vector.shape_cast %31 : vector<1x256xf32> to vector<1x1x256xf32>
    %cst_17 = arith.constant dense<0.000000e+00> : vector<1xf32>
    %33 = vector.multi_reduction <add>, %32, %cst_17 [1, 2] : vector<1x1x256xf32> to vector<1xf32>
    %34 = vector.shape_cast %33 : vector<1xf32> to vector<1x1x1xf32>
    %35 = vector.extract %34[0, 0, 0] : f32 from vector<1x1x1xf32>
    %36 = arith.mulf %20, %24 : vector<1x256xf32>
    %37 = vector.shape_cast %36 : vector<1x256xf32> to vector<1x1x256xf32>
    %cst_18 = arith.constant dense<0.000000e+00> : vector<1xf32>
    %38 = vector.multi_reduction <add>, %37, %cst_18 [1, 2] : vector<1x1x256xf32> to vector<1xf32>
    %39 = vector.shape_cast %38 : vector<1xf32> to vector<1x1x1xf32>
    %40 = vector.extract %39[0, 0, 0] : f32 from vector<1x1x1xf32>
    %41 = arith.mulf %22, %24 : vector<1x256xf32>
    %42 = vector.shape_cast %41 : vector<1x256xf32> to vector<1x1x256xf32>
    %cst_19 = arith.constant dense<0.000000e+00> : vector<1xf32>
    %43 = vector.multi_reduction <add>, %42, %cst_19 [1, 2] : vector<1x1x256xf32> to vector<1xf32>
    %44 = vector.shape_cast %43 : vector<1xf32> to vector<1x1x1xf32>
    %45 = vector.extract %44[0, 0, 0] : f32 from vector<1x1x1xf32>
    %46 = tpu.iota {dimensions = array<i32: 1>} : vector<1x8x128xi32>
    %c0_i32 = arith.constant 0 : i32
    %47 = vector.broadcast %c0_i32 : i32 to vector<1x8x128xi32>
    %48 = arith.cmpi eq, %46, %47 : vector<1x8x128xi32>
    %c1_i32 = arith.constant 1 : i32
    %49 = vector.broadcast %c1_i32 : i32 to vector<1x8x128xi32>
    %50 = arith.cmpi eq, %46, %49 : vector<1x8x128xi32>
    %c2_i32 = arith.constant 2 : i32
    %51 = vector.broadcast %c2_i32 : i32 to vector<1x8x128xi32>
    %52 = arith.cmpi eq, %46, %51 : vector<1x8x128xi32>
    %cst_20 = arith.constant 0.000000e+00 : f32
    %53 = vector.broadcast %45 : f32 to vector<1x8x128xf32>
    %54 = vector.broadcast %cst_20 : f32 to vector<1x8x128xf32>
    %55 = arith.select %52, %53, %54 : vector<1x8x128xi1>, vector<1x8x128xf32>
    %56 = vector.broadcast %40 : f32 to vector<1x8x128xf32>
    %57 = arith.select %50, %56, %55 : vector<1x8x128xi1>, vector<1x8x128xf32>
    %58 = vector.broadcast %35 : f32 to vector<1x8x128xf32>
    %59 = arith.select %48, %58, %57 : vector<1x8x128xi1>, vector<1x8x128xf32>
    %c0_21 = arith.constant 0 : index
    %c0_22 = arith.constant 0 : index
    %c0_23 = arith.constant 0 : index
    %60 = vector.load %arg6[%c0_21, %c0_22, %c0_23] : memref<1x8x128xf32, #tpu.memory_space<vmem>>, vector<1x8x128xf32>
    tpu.vector_store %arg6[%c0_21, %c0_22, %c0_23], %59 {strides = array<i32>} : memref<1x8x128xf32, #tpu.memory_space<vmem>>, vector<1x8x128xf32>,
    return
  }
  func.func @transform_0(%arg0: i32) -> (i32, i32) {
    %c0_i32 = arith.constant 0 : i32
    %c0_i32_0 = arith.constant 0 : i32
    return %c0_i32, %arg0 : i32, i32
  }
  func.func @transform_1(%arg0: i32) -> (i32, i32) {
    %c0_i32 = arith.constant 0 : i32
    %c0_i32_0 = arith.constant 0 : i32
    return %c0_i32, %arg0 : i32, i32
  }
  func.func @transform_2(%arg0: i32) -> (i32, i32) {
    %c0_i32 = arith.constant 0 : i32
    %c0_i32_0 = arith.constant 0 : i32
    return %c0_i32, %arg0 : i32, i32
  }
  func.func @transform_3(%arg0: i32) -> (i32, i32) {
    %c0_i32 = arith.constant 0 : i32
    %c0_i32_0 = arith.constant 0 : i32
    return %c0_i32, %arg0 : i32, i32
  }
  func.func @transform_4(%arg0: i32) -> (i32, i32) {
    %c0_i32 = arith.constant 0 : i32
    %c0_i32_0 = arith.constant 0 : i32
    return %c0_i32, %arg0 : i32, i32
  }
  func.func @transform_5(%arg0: i32) -> (i32, i32, i32) {
    %c0_i32 = arith.constant 0 : i32
    %c0_i32_0 = arith.constant 0 : i32
    %c0_i32_1 = arith.constant 0 : i32
    return %arg0, %c0_i32, %c0_i32_0 : i32, i32, i32
  }
}

</mosaic_0001>

<llo_original>
// kernel: tpu_custom_call.1
$region0: #{tpu_custom_call.1}
  #allocation0 [shape = 'u32[]', space=smem, size = 0x4, offset = 0x4, fixed_abs, tag = 'smem constant byte address 0x4 - core index']
  #allocation1 [shape = 'u32[144,128]{1,0:T(1,128)}', space=vmem, size = 0x12000, scoped, tag = 'internal scratch']
  %s0 = inlined_call_operand.hbm [shape: f32[2,256], index: 0, kind: input, shape index: {}]
  %s1 = inlined_call_operand.hbm [shape: f32[2,256], index: 1, kind: input, shape index: {}]
  %s2 = inlined_call_operand.hbm [shape: f32[2,256], index: 2, kind: input, shape index: {}]
  %s3 = inlined_call_operand.hbm [shape: f32[2,256], index: 3, kind: output, shape index: {0}]
  %s4 = inlined_call_operand.hbm [shape: f32[2,256], index: 4, kind: output, shape index: {1}]
  %s5 = inlined_call_operand.hbm [shape: f32[1,8,128], index: 5, kind: output, shape index: {2}]
  %6 = xla_tuple %s3, %s4, %s5
  %s7 = sld [smem:[#allocation0]]
  $region50: #{tpu_custom_call.1} parent=0
    _
  %s9 = ssub.s32 1, %s7
  %s10 = scalar_select 0, %s9, %s7
  $region1: #{tpu_custom_call.1} parent=0
    #allocation2 [shape = 'u8[2048]{0}', space=vmem, size = 0x800, scoped, tag = 'input window, operand 0, single buffered']
    #allocation3 [shape = 's32[1]{0}', space=sflag, size = 0x4, scoped, tag = 'scoped memory for tpu_custom_call.1']
    #allocation4 [shape = 's32[1]{0}', space=sflag, size = 0x4, scoped, tag = 'scoped memory for tpu_custom_call.1']
    #allocation5 [shape = 'u8[2048]{0}', space=vmem, size = 0x800, scoped, tag = 'input window, operand 1, single buffered']
    #allocation6 [shape = 's32[1]{0}', space=sflag, size = 0x4, scoped, tag = 'scoped memory for tpu_custom_call.1']
    #allocation7 [shape = 'u8[2048]{0}', space=vmem, size = 0x800, scoped, tag = 'input window, operand 2, single buffered']
    #allocation8 [shape = 'u8[2048]{0}', space=vmem, size = 0x800, scoped, tag = 'output window, operand 0, single buffered']
    #allocation9 [shape = 'u8[2048]{0}', space=vmem, size = 0x800, scoped, tag = 'output window, operand 1, single buffered']
    #allocation10 [shape = 's32[1]{0}', space=sflag, size = 0x4, scoped, tag = 'scoped memory for tpu_custom_call.1']
    #allocation11 [shape = 'u8[4096]{0}', space=vmem, size = 0x1000, scoped, tag = 'output window, operand 2, single buffered']
    %11 = vsyncpa [#allocation3], 0
    %12 = vsyncpa [#allocation6], 0
    %13 = vsyncpa [#allocation4], 0
    %14 = vsyncpa [#allocation10], 0
    // Predicated region
    $region2: #{tpu_custom_call.1} parent=1 // pred_check
      _
    $region3: #{tpu_custom_call.1} parent=1 // pred_check_branch
      %16 = sbr.rel (0) target = $region5
    $region4: #{tpu_custom_call.1} parent=1 // pred_region
      %s18 = ssub.s32 64, 64
      %19 = vsyncadd [#allocation3], %s18
      %s21 = sshll.u32 [#allocation2], 4
      %s22 = int_to_ptr.vmem [resolvable:$true] %s21
      %24 = dma.hbm_to_vmem [thread:$0]  %s0, 64, %s22, [#allocation3]
    $region5: #{tpu_custom_call.1} parent=1 // pred_fallthru
      _
    // Predicated region
    $region6: #{tpu_custom_call.1} parent=1 // pred_check
      _
    $region7: #{tpu_custom_call.1} parent=1 // pred_check_branch
      %26 = sbr.rel (0) target = $region9
    $region8: #{tpu_custom_call.1} parent=1 // pred_region
      %s28 = ssub.s32 64, 64
      %29 = vsyncadd [#allocation6], %s28
      %s31 = sshll.u32 [#allocation5], 4
      %s32 = int_to_ptr.vmem [resolvable:$true] %s31
      %34 = dma.hbm_to_vmem [thread:$0]  %s1, 64, %s32, [#allocation6]
    $region9: #{tpu_custom_call.1} parent=1 // pred_fallthru
      _
    // Predicated region
    $region10: #{tpu_custom_call.1} parent=1 // pred_check
      _
    $region11: #{tpu_custom_call.1} parent=1 // pred_check_branch
      %36 = sbr.rel (0) target = $region13
    $region12: #{tpu_custom_call.1} parent=1 // pred_region
      %s38 = ssub.s32 64, 64
      %39 = vsyncadd [#allocation6], %s38
      %s41 = sshll.u32 [#allocation7], 4
      %s42 = int_to_ptr.vmem [resolvable:$true] %s41
      %44 = dma.hbm_to_vmem [thread:$0]  %s2, 64, %s42, [#allocation6]
    $region13: #{tpu_custom_call.1} parent=1 // pred_fallthru
      _
    // Predicated region
    $region14: #{tpu_custom_call.1} parent=1 // pred_check
      _
    $region15: #{tpu_custom_call.1} parent=1 // pred_check_branch
      %46 = sbr.rel (0) target = $region17
    $region16: #{tpu_custom_call.1} parent=1 // pred_region
      %47 = dma.done [#allocation3], 64
    $region17: #{tpu_custom_call.1} parent=1 // pred_fallthru
      _
    // Predicated region
    $region18: #{tpu_custom_call.1} parent=1 // pred_check
      _
    $region19: #{tpu_custom_call.1} parent=1 // pred_check_branch
      %49 = sbr.rel (0) target = $region21
    $region20: #{tpu_custom_call.1} parent=1 // pred_region
      %50 = dma.done [#allocation6], 64
    $region21: #{tpu_custom_call.1} parent=1 // pred_fallthru
      _
    // Predicated region
    $region22: #{tpu_custom_call.1} parent=1 // pred_check
      _
    $region23: #{tpu_custom_call.1} parent=1 // pred_check_branch
      %52 = sbr.rel (0) target = $region25
    $region24: #{tpu_custom_call.1} parent=1 // pred_region
      %53 = dma.done [#allocation6], 64
    $region25: #{tpu_custom_call.1} parent=1 // pred_fallthru
      _
    %v54 = vld [vmem:[#allocation2] sm:$0xf]
    %v55 = vld [vmem:[#allocation5] sm:$0xf]
    %v56 = vld [vmem:[#allocation7] sm:$0xf]
    %v57 = vlog2.pop %v56
    %v58 = vmul.f32 %v57, 0.6931472
    %v59 = vmax.f32 %v58, -100.0
    %v60 = vsub.f32 1.0, %v56
    %v61 = vlog2.pop %v60
    %v62 = vmul.f32 %v61, 0.6931472
    %v63 = vmax.f32 %v62, -100.0
    %v64 = vmul.f32 %v54, %v59
    %v65 = vsub.f32 1.0, %v54
    %v66 = vmul.f32 %v65, %v63
    %v67 = vadd.f32 %v64, %v66
    %v68 = vsub.f32 0.0, %v67
    %v69 = vmul.f32 %v68, %v55
    %v72 = vunpack.c.l.s4 1983009808
    %v73 = vunpack.c.0.s8 %v72
    %v74 = vlaneseq
    %v75 = vshrl.u32 %v74, 7
    %v76 = vsub.s32 %v73, %v75
    %v77 = vrot.slane %v54, %v76
    %v78 = vcombine.high %v77, %v77
    %vm81 = vcmask 1041408
    %v82 = vsel %vm81, %v77, 0.0
    %v83 = vrot.slane %v82, 4
    %v84 = vadd.f32 %v82, %v83
    %v85 = vrot.slane %v84, 2
    %v86 = vadd.f32 %v84, %v85
    %v87 = vrot.slane %v86, 1
    %v88 = vadd.f32 %v86, %v87
    %v89 = vsel %vm81, %v78, 0.0
    %v90 = vrot.slane %v89, 4
    %v91 = vadd.f32 %v89, %v90
    %v92 = vrot.slane %v91, 2
    %v93 = vadd.f32 %v91, %v92
    %v94 = vrot.slane %v93, 1
    %v95 = vadd.f32 %v93, %v94
    %v96 = vsub.f32 2.0, %v88
    %v97 = vsub.f32 2.0, %v95
    %v100 = vunpack.c.l.s4 1983009808
    %v101 = vunpack.c.0.s8 %v100
    %v102 = vlaneseq
    %v103 = vshrl.u32 %v102, 7
    %v104 = vsub.s32 %v101, %v103
    %v105 = vrot.slane %v55, %v104
    %v106 = vcombine.high %v105, %v105
    %v109 = vsel %vm81, %v105, 0.0
    %v110 = vrot.slane %v109, 4
    %v111 = vadd.f32 %v109, %v110
    %v112 = vrot.slane %v111, 2
    %v113 = vadd.f32 %v111, %v112
    %v114 = vrot.slane %v113, 1
    %v115 = vadd.f32 %v113, %v114
    %v116 = vsel %vm81, %v106, 0.0
    %v117 = vrot.slane %v116, 4
    %v118 = vadd.f32 %v116, %v117
    %v119 = vrot.slane %v118, 2
    %v120 = vadd.f32 %v118, %v119
    %v121 = vrot.slane %v120, 1
    %v122 = vadd.f32 %v120, %v121
    %v125 = vunpack.c.l.s4 1983009808
    %v126 = vunpack.c.0.s8 %v125
    %v127 = vlaneseq
    %v128 = vshrl.u32 %v127, 7
    %v129 = vsub.s32 %v126, %v128
    %v130 = vrot.slane %v69, %v129
    %v131 = vcombine.high %v130, %v130
    %v134 = vsel %vm81, %v130, 0.0
    %v135 = vrot.slane %v134, 4
    %v136 = vadd.f32 %v134, %v135
    %v137 = vrot.slane %v136, 2
    %v138 = vadd.f32 %v136, %v137
    %v139 = vrot.slane %v138, 1
    %v140 = vadd.f32 %v138, %v139
    %v141 = vsel %vm81, %v131, 0.0
    %v142 = vrot.slane %v141, 4
    %v143 = vadd.f32 %v141, %v142
    %v144 = vrot.slane %v143, 2
    %v145 = vadd.f32 %v143, %v144
    %v146 = vrot.slane %v145, 1
    %v147 = vadd.f32 %v145, %v146
    %148 = vst [vmem:[#allocation8] sm:$0xf] %v69
    %v149 = vmul.f32 %v96, %v105
    %v150 = vmul.f32 %v97, %v106
    %v153 = vcombine.low %v149, %v150
    %v155 = vunpack.c.l.s4 1983009808
    %v156 = vunpack.c.0.s8 %v155
    %v157 = vlaneseq
    %v158 = vshrl.u32 %v157, 7
    %v159 = vsub.s32 %v156, %v158
    %v160 = vrot.slane %v153, %v159
    %162 = vst [vmem:[#allocation9] sm:$0xf] %v160
    %v163 = vmul.f32 %v88, %v140
    %v164 = vmul.f32 %v95, %v147
    %vm165 = vcmask 1040384
    %v166 = vsel %vm165, %v163, 0.0
    %v167 = vsel %vm165, %v164, 0.0
    %v168 = vadd.f32 %v166, %v167
    %169 = vadd.xlane.f32.xlu0 %v168
    %v170 = vpop.xlane.xlu0 %169
    %v171 = vrot.slane %v170, 4
    %v172 = vadd.f32 %v170, %v171
    %v173 = vrot.slane %v172, 2
    %v174 = vadd.f32 %v172, %v173
    %v175 = vrot.slane %v174, 1
    %v176 = vadd.f32 %v174, %v175
    %s177 = vtos %v176
    %v178 = vmul.f32 %v88, %v115
    %v179 = vmul.f32 %v95, %v122
    %v180 = vsel %vm165, %v178, 0.0
    %v181 = vsel %vm165, %v179, 0.0
    %v182 = vadd.f32 %v180, %v181
    %183 = vadd.xlane.f32.xlu0 %v182
    %v184 = vpop.xlane.xlu0 %183
    %v185 = vrot.slane %v184, 4
    %v186 = vadd.f32 %v184, %v185
    %v187 = vrot.slane %v186, 2
    %v188 = vadd.f32 %v186, %v187
    %v189 = vrot.slane %v188, 1
    %v190 = vadd.f32 %v188, %v189
    %s191 = vtos %v190
    %v192 = vmul.f32 %v96, %v115
    %v193 = vmul.f32 %v97, %v122
    %v194 = vsel %vm165, %v192, 0.0
    %v195 = vsel %vm165, %v193, 0.0
    %v196 = vadd.f32 %v194, %v195
    %197 = vadd.xlane.f32.xlu0 %v196
    %v198 = vpop.xlane.xlu0 %197
    %v199 = vrot.slane %v198, 4
    %v200 = vadd.f32 %v198, %v199
    %v201 = vrot.slane %v200, 2
    %v202 = vadd.f32 %v200, %v201
    %v203 = vrot.slane %v202, 1
    %v204 = vadd.f32 %v202, %v203
    %s205 = vtos %v204
    %v206 = vlaneseq
    %v207 = vshrl.u32 %v206, 7
    %vm208 = vcmp.eq.s32.totalorder %v207, 0
    %vm209 = vcmp.eq.s32.totalorder %v207, 1
    %vm210 = vcmp.eq.s32.totalorder %v207, 2
    %v211 = vstv %s205
    %v212 = vsel %vm210, %v211, 0.0
    %v213 = vstv %s191
    %v214 = vsel %vm209, %v213, %v212
    %v215 = vstv %s177
    %v216 = vsel %vm208, %v215, %v214
    %217 = vst [vmem:[#allocation11] sm:$0xff] %v216
    // Predicated region
    $region26: #{tpu_custom_call.1} parent=1 // pred_check
      _
    $region27: #{tpu_custom_call.1} parent=1 // pred_check_branch
      %219 = sbr.rel (0) target = $region29
    $region28: #{tpu_custom_call.1} parent=1 // pred_region
      %s221 = ssub.s32 64, 64
      %222 = vsyncadd [#allocation4], %s221
      %s224 = sshll.u32 [#allocation8], 4
      %s225 = int_to_ptr.vmem [resolvable:$true] %s224
      %227 = dma.vmem_to_hbm [thread:$0]  %s225, 64, %s3, [#allocation4]
    $region29: #{tpu_custom_call.1} parent=1 // pred_fallthru
      _
    // Predicated region
    $region30: #{tpu_custom_call.1} parent=1 // pred_check
      _
    $region31: #{tpu_custom_call.1} parent=1 // pred_check_branch
      %229 = sbr.rel (0) target = $region33
    $region32: #{tpu_custom_call.1} parent=1 // pred_region
      %s231 = ssub.s32 64, 64
      %232 = vsyncadd [#allocation10], %s231
      %s234 = sshll.u32 [#allocation9], 4
      %s235 = int_to_ptr.vmem [resolvable:$true] %s234
      %237 = dma.vmem_to_hbm [thread:$0]  %s235, 64, %s4, [#allocation10]
    $region33: #{tpu_custom_call.1} parent=1 // pred_fallthru
      _
    // Predicated region
    $region34: #{tpu_custom_call.1} parent=1 // pred_check
      _
    $region35: #{tpu_custom_call.1} parent=1 // pred_check_branch
      %239 = sbr.rel (0) target = $region37
    $region36: #{tpu_custom_call.1} parent=1 // pred_region
      %s241 = ssub.s32 128, 128
      %242 = vsyncadd [#allocation10], %s241
      %s244 = sshll.u32 [#allocation11], 4
      %s245 = int_to_ptr.vmem [resolvable:$true] %s244
      %247 = dma.vmem_to_hbm [thread:$0]  %s245, 128, %s5, [#allocation10]
    $region37: #{tpu_custom_call.1} parent=1 // pred_fallthru
      _
    // Predicated region
    $region38: #{tpu_custom_call.1} parent=1 // pred_check
      _
    $region39: #{tpu_custom_call.1} parent=1 // pred_check_branch
      %249 = sbr.rel (0) target = $region41
    $region40: #{tpu_custom_call.1} parent=1 // pred_region
      %250 = dma.done [#allocation4], 64
    $region41: #{tpu_custom_call.1} parent=1 // pred_fallthru
      _
    // Predicated region
    $region42: #{tpu_custom_call.1} parent=1 // pred_check
      _
    $region43: #{tpu_custom_call.1} parent=1 // pred_check_branch
      %252 = sbr.rel (0) target = $region45
    $region44: #{tpu_custom_call.1} parent=1 // pred_region
      %253 = dma.done [#allocation10], 64
    $region45: #{tpu_custom_call.1} parent=1 // pred_fallthru
      _
    // Predicated region
    $region46: #{tpu_custom_call.1} parent=1 // pred_check
      _
    $region47: #{tpu_custom_call.1} parent=1 // pred_check_branch
      %255 = sbr.rel (0) target = $region49
    $region48: #{tpu_custom_call.1} parent=1 // pred_region
      %256 = dma.done [#allocation10], 128
    $region49: #{tpu_custom_call.1} parent=1 // pred_fallthru
      _
    %257 = vsyncpa [#allocation3], 1
    %258 = vsyncpa [#allocation6], 1
    %259 = vsyncpa [#allocation4], 1
    %260 = vsyncpa [#allocation10], 1

</llo_original>
